<compile_context>
chip_gen: v5e
topology: v5e:2x2
jax: 0.10.0
libtpu: 0.0.40
codegen_flags: <defaults>
</compile_context>

<pallas_src>
import math

import jax
import jax.numpy as jnp
from jax.experimental import pallas as pl
from jax.experimental.pallas import tpu as pltpu


_SUBLANE = 8                       # f32 sublane granule (second-to-last dim)
_DEFAULT_TM = 2048                 # batch-tile rows for the streaming path
_SINGLE_SHOT_MAX_BYTES = 8 << 20   # footprint below which we skip the grid


def _round_up(n, m):
    return ((n + m - 1) // m) * m


def _physical_vmem_bytes():
    """Per-core physical VMEM; conservative fallback (v7x, 64 MiB) on failure."""
    try:
        info = pltpu.get_tpu_info()
        for attr in ("vmem_capacity_bytes", "vmem_size_bytes", "vmem_bytes"):
            v = getattr(info, attr, None)
            if v:
                return int(v)
    except Exception:
        pass
    return 64 << 20


def _vmem_limit_bytes(needed):
    """Generation-aware vmem_limit: never below `needed`; normally capped at
    ~7/8 of physical (≈56 MiB on v7x, ≈112 MiB on v5e/v6e) for compiler
    scratch headroom."""
    phys = _physical_vmem_bytes()
    cap = (phys // 8) * 7
    want = needed + (4 << 20)                    # headroom for compiler scratch
    if want <= cap:
        return max(want, min(32 << 20, cap))     # at least the comfortable default
    # Resident footprint exceeds the safe cap: do NOT silently under-provision.
    # (A K/H contraction-tiled fallback would be the right fix for very large
    #  hidden sizes; unnecessary at these shapes.)
    return min(want, phys)


def _simple_nn_kernel(x_ref, w1_ref, b1_ref, w2_ref, b2_ref, o_ref):
    # fc1 -> tanh -> fc2 -> tanh, all in f32 (MXU accumulates f32; VPU/EUP work
    # hides under the MXU / DMA and is v5e-safe).
    x = x_ref[...]
    h = jnp.dot(x, w1_ref[...], preferred_element_type=jnp.float32) + b1_ref[...]
    h = jnp.tanh(h)
    y = jnp.dot(h, w2_ref[...], preferred_element_type=jnp.float32) + b2_ref[...]
    o_ref[...] = jnp.tanh(y).astype(o_ref.dtype)


def simple_nn_forward(x, w1, b1, w2, b2, *, tm=None, force_stream=False):
    """x: (B, input); w1: (input, hidden); b1: (1, hidden) or (hidden,);
    w2: (hidden, output); b2: (1, output) or (output,).  Returns (B, output) f32."""
    x = jnp.asarray(x, jnp.float32)
    w1 = jnp.asarray(w1, jnp.float32)
    w2 = jnp.asarray(w2, jnp.float32)
    b1 = jnp.asarray(b1, jnp.float32).reshape(1, -1)
    b2 = jnp.asarray(b2, jnp.float32).reshape(1, -1)

    B, K = x.shape
    H = w1.shape[1]
    O = w2.shape[1]

    weight_bytes = 4 * (K * H + H + H * O + O)
    row_bytes = 4 * (K + H + O)            # x row + h intermediate row + out row
    whole_bytes = weight_bytes + B * row_bytes

    out_shape = jax.ShapeDtypeStruct((B, O), jnp.float32)

    if not force_stream and whole_bytes <= _SINGLE_SHOT_MAX_BYTES:
        # --- Single-shot path: one no-grid invocation, whole arrays in VMEM. ---
        vmem = pl.BlockSpec(memory_space=pltpu.MemorySpace.VMEM)
        return pl.pallas_call(
            _simple_nn_kernel,
            out_shape=out_shape,
            in_specs=[vmem] * 5,
            out_specs=vmem,
            compiler_params=pltpu.CompilerParams(
                vmem_limit_bytes=_vmem_limit_bytes(whole_bytes),
            ),
        )(x, w1, b1, w2, b2)

    # --- Streaming path: weight-stationary, batch-tiled (partial last tile). ---
    tm = _DEFAULT_TM if tm is None else int(tm)
    tm = max(_SUBLANE, _round_up(min(tm, B), _SUBLANE))

    def streaming_bytes(t):
        # Double-buffered x/out tiles + intermediate h tile + (double-buffered)
        # resident weights/biases.  (Constant-index weight blocks could be
        # single-buffered via pipeline_mode=pl.Buffered(1); negligible here.)
        return 4 * (2 * t * (K + O) + t * H) + 2 * weight_bytes

    cap = (_physical_vmem_bytes() // 8) * 7
    # Keep >= 4 tiles so both v7x TensorCores stay busy, and stay inside VMEM.
    while tm > 256 and (pl.cdiv(B, tm) < 4 or streaming_bytes(tm) > cap):
        tm = _round_up(tm // 2, _SUBLANE)

    n_tiles = pl.cdiv(B, tm)               # partial last tile handled by Pallas

    return pl.pallas_call(
        _simple_nn_kernel,
        out_shape=out_shape,
        grid=(n_tiles,),
        in_specs=[
            pl.BlockSpec((tm, K), lambda i: (i, 0)),   # x: streamed per batch tile
            pl.BlockSpec((K, H), lambda i: (0, 0)),    # w1: resident
            pl.BlockSpec((1, H), lambda i: (0, 0)),    # b1: resident
            pl.BlockSpec((H, O), lambda i: (0, 0)),    # w2: resident
            pl.BlockSpec((1, O), lambda i: (0, 0)),    # b2: resident
        ],
        out_specs=pl.BlockSpec((tm, O), lambda i: (i, 0)),
        compiler_params=pltpu.CompilerParams(
            dimension_semantics=("parallel",),          # both TCs on v7x
            vmem_limit_bytes=_vmem_limit_bytes(streaming_bytes(tm)),
        ),
    )(x, w1, b1, w2, b2)


def init_params(key, input_size, hidden_size, output_size):
    """Matches the PyTorch module: weights ~ U(-0.5, 0.5);
    biases keep nn.Linear default U(-1/sqrt(fan_in), 1/sqrt(fan_in))."""
    k1, k2, k3, k4 = jax.random.split(key, 4)
    w1 = jax.random.uniform(k1, (input_size, hidden_size), jnp.float32, -0.5, 0.5)
    w2 = jax.random.uniform(k2, (hidden_size, output_size), jnp.float32, -0.5, 0.5)
    bound1 = 1.0 / math.sqrt(input_size)
    bound2 = 1.0 / math.sqrt(hidden_size)
    b1 = jax.random.uniform(k3, (1, hidden_size), jnp.float32, -bound1, bound1)
    b2 = jax.random.uniform(k4, (1, output_size), jnp.float32, -bound2, bound2)
    return w1, b1, w2, b2


if __name__ == "__main__":
    input_size, hidden_size, output_size = 16, 32, 8

    key = jax.random.PRNGKey(0)
    kp, kx1, kx2, kx3 = jax.random.split(key, 4)
    w1, b1, w2, b2 = init_params(kp, input_size, hidden_size, output_size)

    def ref_fn(x):
        return jnp.tanh(jnp.tanh(x @ w1 + b1) @ w2 + b2)

    # 1) Tiny batch: single-shot (no-grid) whole-array-in-VMEM path.
    x_small = jax.random.normal(kx1, (8, input_size), jnp.float32)
    out_small = simple_nn_forward(x_small, w1, b1, w2, b2)
    jax.block_until_ready(out_small)
    assert out_small.shape == (8, output_size)
    assert jnp.allclose(out_small, ref_fn(x_small), atol=1e-4, rtol=1e-4)

    # 2) Mid-size batch: footprint << 8 MiB, so still single-shot (no grid overhead).
    x_mid = jax.random.normal(kx2, (1024, input_size), jnp.float32)
    out_mid = simple_nn_forward(x_mid, w1, b1, w2, b2)
    jax.block_until_ready(out_mid)
    assert out_mid.shape == (1024, output_size)
    assert jnp.allclose(out_mid, ref_fn(x_mid), atol=1e-4, rtol=1e-4)

    # 3) Streaming path (forced, small tile to keep the test small): batch-tiled
    #    weight-stationary pipeline with a partial last tile (1000 = 3*256 + 232),
    #    which also verifies the masked edge-block writes flagged in the review.
    x_big = jax.random.normal(kx3, (1000, input_size), jnp.float32)
    out_big = simple_nn_forward(x_big, w1, b1, w2, b2, tm=256, force_stream=True)
    jax.block_until_ready(out_big)
    assert out_big.shape == (1000, output_size)
    assert jnp.allclose(out_big, ref_fn(x_big), atol=1e-4, rtol=1e-4)

    print("KERNEL_OK")
</pallas_src>

<mosaic_0001>
module attributes {stable_mosaic.version = 11 : i64} {
  func.func @_simple_nn_kernel(%arg0: memref<8x16xf32, #tpu.memory_space<vmem>>, %arg1: memref<16x32xf32, #tpu.memory_space<vmem>>, %arg2: memref<1x32xf32, #tpu.memory_space<vmem>>, %arg3: memref<32x8xf32, #tpu.memory_space<vmem>>, %arg4: memref<1x8xf32, #tpu.memory_space<vmem>>, %arg5: memref<8x8xf32, #tpu.memory_space<vmem>>) attributes {dimension_semantics = [], scalar_prefetch = 0 : i64, scratch_operands = 0 : i64, tpu.core_type = #tpu.core_type<tc>} {
    %c0 = arith.constant 0 : index
    %c0_0 = arith.constant 0 : index
    %0 = vector.load %arg0[%c0, %c0_0] : memref<8x16xf32, #tpu.memory_space<vmem>>, vector<8x16xf32>
    %c0_1 = arith.constant 0 : index
    %c0_2 = arith.constant 0 : index
    %1 = vector.load %arg1[%c0_1, %c0_2] : memref<16x32xf32, #tpu.memory_space<vmem>>, vector<16x32xf32>
    %cst = arith.constant dense<0.000000e+00> : vector<8x32xf32>
    %2 = tpu.matmul %0, %1, %cst {dimension_numbers = #tpu.dot_dimension_numbers<[1], [0], [0], [1], [0, 0, 1, 1], [], []>} : vector<8x16xf32>, vector<16x32xf32>, vector<8x32xf32> -> vector<8x32xf32>
    %c0_3 = arith.constant 0 : index
    %c0_4 = arith.constant 0 : index
    %3 = vector.load %arg2[%c0_3, %c0_4] : memref<1x32xf32, #tpu.memory_space<vmem>>, vector<1x32xf32>
    %4 = vector.broadcast %3 : vector<1x32xf32> to vector<8x32xf32>
    %5 = arith.addf %2, %4 : vector<8x32xf32>
    %6 = math.tanh %5 : vector<8x32xf32>
    %c0_5 = arith.constant 0 : index
    %c0_6 = arith.constant 0 : index
    %7 = vector.load %arg3[%c0_5, %c0_6] : memref<32x8xf32, #tpu.memory_space<vmem>>, vector<32x8xf32>
    %cst_7 = arith.constant dense<0.000000e+00> : vector<8x8xf32>
    %8 = tpu.matmul %6, %7, %cst_7 {dimension_numbers = #tpu.dot_dimension_numbers<[1], [0], [0], [1], [0, 0, 1, 1], [], []>} : vector<8x32xf32>, vector<32x8xf32>, vector<8x8xf32> -> vector<8x8xf32>
    %c0_8 = arith.constant 0 : index
    %c0_9 = arith.constant 0 : index
    %9 = vector.load %arg4[%c0_8, %c0_9] : memref<1x8xf32, #tpu.memory_space<vmem>>, vector<1x8xf32>
    %10 = vector.broadcast %9 : vector<1x8xf32> to vector<8x8xf32>
    %11 = arith.addf %8, %10 : vector<8x8xf32>
    %12 = math.tanh %11 : vector<8x8xf32>
    %c0_10 = arith.constant 0 : index
    %c0_11 = arith.constant 0 : index
    %13 = vector.load %arg5[%c0_10, %c0_11] : memref<8x8xf32, #tpu.memory_space<vmem>>, vector<8x8xf32>
    tpu.vector_store %arg5[%c0_10, %c0_11], %12 {strides = array<i32>} : memref<8x8xf32, #tpu.memory_space<vmem>>, vector<8x8xf32>,
    return
  }
}

</mosaic_0001>

<llo_original>
// kernel: tpu_custom_call.1
$region0: #{tpu_custom_call.1}
  #allocation0 [shape = 'u32[]', space=smem, size = 0x4, offset = 0x4, fixed_abs, tag = 'smem constant byte address 0x4 - core index']
  #allocation1 [shape = 'u32[72,128]{1,0:T(1,128)}', space=vmem, size = 0x9000, scoped, tag = 'internal scratch']
  %s0 = inlined_call_operand.vmem [shape: f32[8,16], index: 0, kind: input, shape index: {}]
  %s1 = inlined_call_operand.vmem [shape: f32[16,32], index: 1, kind: input, shape index: {}]
  %s2 = inlined_call_operand.vmem [shape: f32[1,32], index: 2, kind: input, shape index: {}]
  %s3 = inlined_call_operand.vmem [shape: f32[32,8], index: 3, kind: input, shape index: {}]
  %s4 = inlined_call_operand.vmem [shape: f32[1,8], index: 4, kind: input, shape index: {}]
  %s5 = inlined_call_operand.hbm [shape: f32[8,8], index: 5, kind: output, shape index: {}]
  %s6 = sld [smem:[#allocation0]]
  $region30: #{tpu_custom_call.1} parent=0
    _
  %s8 = ssub.s32 1, %s6
  %s9 = scalar_select 0, %s8, %s6
  $region1: #{tpu_custom_call.1} parent=0
    #allocation2 [shape = 'u8[4096]{0}', space=vmem, size = 0x1000, scoped, tag = 'output window, operand 0, single buffered']
    #allocation3 [shape = 's32[1]{0}', space=sflag, size = 0x4, scoped, tag = 'scoped memory for tpu_custom_call.1']
    %10 = vsyncpa [#allocation3], 0
    // Predicated region
    $region2: #{tpu_custom_call.1} parent=1 // pred_check
      _
    $region3: #{tpu_custom_call.1} parent=1 // pred_check_branch
      %12 = sbr.rel (0) target = $region5
    $region4: #{tpu_custom_call.1} parent=1 // pred_region
      _
    $region5: #{tpu_custom_call.1} parent=1 // pred_fallthru
      _
    // Predicated region
    $region6: #{tpu_custom_call.1} parent=1 // pred_check
      _
    $region7: #{tpu_custom_call.1} parent=1 // pred_check_branch
      %14 = sbr.rel (0) target = $region9
    $region8: #{tpu_custom_call.1} parent=1 // pred_region
      _
    $region9: #{tpu_custom_call.1} parent=1 // pred_fallthru
      _
    // Predicated region
    $region10: #{tpu_custom_call.1} parent=1 // pred_check
      _
    $region11: #{tpu_custom_call.1} parent=1 // pred_check_branch
      %16 = sbr.rel (0) target = $region13
    $region12: #{tpu_custom_call.1} parent=1 // pred_region
      _
    $region13: #{tpu_custom_call.1} parent=1 // pred_fallthru
      _
    // Predicated region
    $region14: #{tpu_custom_call.1} parent=1 // pred_check
      _
    $region15: #{tpu_custom_call.1} parent=1 // pred_check_branch
      %18 = sbr.rel (0) target = $region17
    $region16: #{tpu_custom_call.1} parent=1 // pred_region
      _
    $region17: #{tpu_custom_call.1} parent=1 // pred_fallthru
      _
    // Predicated region
    $region18: #{tpu_custom_call.1} parent=1 // pred_check
      _
    $region19: #{tpu_custom_call.1} parent=1 // pred_check_branch
      %20 = sbr.rel (0) target = $region21
    $region20: #{tpu_custom_call.1} parent=1 // pred_region
      _
    $region21: #{tpu_custom_call.1} parent=1 // pred_fallthru
      _
    %v21 = vld [vmem:[%s0] sm:$0xff]
    %v22 = vld [vmem:[%s1] sm:$0xff]
    %v23 = vld [vmem:[%s1 + $0x8] sm:$0xff]
    %v24 = vld [vmem:[%s2] sm:$0x1]
    %v26 = vperm.slane %v24, 0
    %vm28 = vcmask 130048
    %v30 = vsel %vm28, %v21, 0
    %32 = vmatpush.msra.mxu0 0.0
    %33 = vmatpush.msra.mxu0 0.0
    %34 = vmatpush.msra.mxu0 0.0
    %35 = vmatpush.msra.mxu0 0.0
    %36 = vmatpush.msra.mxu0 0.0
    %37 = vmatpush.msra.mxu0 0.0
    %38 = vmatpush.msra.mxu0 0.0
    %39 = vmatpush.msra.mxu0 0.0
    %40 = vmatpush.msra.mxu0 0.0
    %41 = vmatpush.msra.mxu0 0.0
    %42 = vmatpush.msra.mxu0 0.0
    %43 = vmatpush.msra.mxu0 0.0
    %44 = vmatpush.msra.mxu0 0.0
    %45 = vmatpush.msra.mxu0 0.0
    %46 = vmatpush.msra.mxu0 %v23
    %47 = vmatpush.msra.mxu0 %v22
    %48 = vmatmul.f32.gmra.mxu0 %v30
    %v49 = vpop.f32.mrf.mxu0
    %v50 = vadd.f32 %v26, %v49
    %51 = vdwg.mxu0
    %v52 = vtanh.pop %v50
    %v53 = vld [vmem:[%s3] sm:$0xff]
    %v54 = vld [vmem:[%s3 + $0x8] sm:$0xff]
    %v55 = vld [vmem:[%s3 + $0x10] sm:$0xff]
    %v56 = vld [vmem:[%s3 + $0x18] sm:$0xff]
    %v57 = vld [vmem:[%s4] sm:$0x1]
    %v59 = vperm.slane %v57, 0
    %vm61 = vcmask 261120
    %v63 = vsel %vm61, %v52, 0
    %65 = vmatpush.msra.mxu0 0.0
    %66 = vmatpush.msra.mxu0 0.0
    %67 = vmatpush.msra.mxu0 0.0
    %68 = vmatpush.msra.mxu0 0.0
    %69 = vmatpush.msra.mxu0 0.0
    %70 = vmatpush.msra.mxu0 0.0
    %71 = vmatpush.msra.mxu0 0.0
    %72 = vmatpush.msra.mxu0 0.0
    %73 = vmatpush.msra.mxu0 0.0
    %74 = vmatpush.msra.mxu0 0.0
    %75 = vmatpush.msra.mxu0 0.0
    %76 = vmatpush.msra.mxu0 0.0
    %77 = vmatpush.msra.mxu0 %v56
    %78 = vmatpush.msra.mxu0 %v55
    %79 = vmatpush.msra.mxu0 %v54
    %80 = vmatpush.msra.mxu0 %v53
    %81 = vmatmul.f32.gmra.mxu0 %v63
    %v82 = vpop.f32.mrf.mxu0
    %v83 = vadd.f32 %v59, %v82
    %84 = vdwg.mxu0
    %v85 = vtanh.pop %v83
    %vm86 = vcmask 64512
    %87 = vst.msk [vmem:[#allocation2] sm:$0xff] %vm86, %v85
    // Predicated region
    $region22: #{tpu_custom_call.1} parent=1 // pred_check
      _
    $region23: #{tpu_custom_call.1} parent=1 // pred_check_branch
      %89 = sbr.rel (0) target = $region25
    $region24: #{tpu_custom_call.1} parent=1 // pred_region
      %91 = vsyncadd [#allocation3], 0
      %s93 = sshll.u32 [#allocation2], 4
      %s94 = int_to_ptr.vmem [resolvable:$true] %s93
      %s95 = sshll.u32 %s5, 4
      %s96 = int_to_ptr.hbm [resolvable:$true] %s95
      %98 = dma.vmem_to_hbm [thread:$0]  %s94, 128, %s96, [#allocation3]
    $region25: #{tpu_custom_call.1} parent=1 // pred_fallthru
      _
    // Predicated region
    $region26: #{tpu_custom_call.1} parent=1 // pred_check
      _
    $region27: #{tpu_custom_call.1} parent=1 // pred_check_branch
      %100 = sbr.rel (0) target = $region29
    $region28: #{tpu_custom_call.1} parent=1 // pred_region
      %102 = dma.done [#allocation3], 128
    $region29: #{tpu_custom_call.1} parent=1 // pred_fallthru
      _
    %103 = vsyncpa [#allocation3], 1

</llo_original>
